<compile_context>
chip_gen: v5e
topology: v5e:2x2
jax: 0.10.0
libtpu: 0.0.40
codegen_flags: <defaults>
</compile_context>

<pallas_src>
import functools

import jax
import jax.numpy as jnp
from jax.experimental import pallas as pl
from jax.experimental.pallas import tpu as pltpu

# Plain Python float "minus infinity" stand-in (avoids inf-inf = nan and avoids
# the captured-constant tracing error a module-level jnp scalar would cause).
_NEG_BIG = -1e30


def _round_up(x: int, m: int) -> int:
    return ((x + m - 1) // m) * m


def _choose_tiles(B: int, C: int, tb_max: int, tc_max: int):
    """Pick (TB, TC) so no wrapper-side padding of x is ever needed."""
    # C tile: whole row when it fits, otherwise a lane-dense multiple of 128
    # (the ragged last tile is masked in-kernel).
    if C <= tc_max:
        TC = C
    else:
        TC = max(128, (tc_max // 128) * 128)
    # B tile: multiple of 8 (or the full batch when B <= 8).  Aim for >= 2
    # B tiles so the "parallel" axis can shard over v7x's two TensorCores.
    if B <= 8:
        TB = B
    else:
        tb_cap = max(8, (tb_max // 8) * 8)
        half = _round_up((B + 1) // 2, 8)
        TB = min(tb_cap, half, _round_up(B, 8))
    return TB, TC


def _circle_loss_kernel(x_ref, label_ref, out_ref, m_sc, s_sc, sp_sc, *,
                        margin, gamma, c_total, last_tile_padded):
    # x_ref:     (TB, TC) similarity tile (native dtype, cast to f32 here)
    # label_ref: (TB, 1)  int32 positive-class index per row
    # out_ref:   (TB, 1)  f32 per-row softplus(loss), written at the last k
    # m_sc/s_sc/sp_sc: (TB, 1) f32 running max / running sum / sp accumulator
    k = pl.program_id(1)
    last_k = pl.num_programs(1) - 1

    @pl.when(k == 0)
    def _init():
        m_sc[...] = jnp.full_like(m_sc, _NEG_BIG)
        s_sc[...] = jnp.zeros_like(s_sc)
        sp_sc[...] = jnp.zeros_like(sp_sc)

    def _update(apply_col_mask):
        x = x_ref[...].astype(jnp.float32)          # f32 compute regardless of input dtype
        tb, tc = x.shape

        # Index arithmetic hoisted off the per-element path: plain lane iota
        # compared against the per-row local label (TB,1) and, only on the
        # padded last tile, against a scalar column bound.
        lane = jax.lax.broadcasted_iota(jnp.int32, (tb, tc), 1)
        lbl_local = label_ref[...] - k * tc         # (TB, 1) int32
        pos = lane == lbl_local                     # global one-hot restricted to this tile

        # Accumulate the single positive similarity per row across C tiles.
        sp_sc[...] += jnp.sum(jnp.where(pos, x, 0.0), axis=1, keepdims=True)

        # Negative logits: an = clamp_min(sn + m, 0); logit_n = an*(sn - m)*gamma
        an = jnp.maximum(x + margin, 0.0)
        logit_n = an * (x - margin) * gamma
        logit_n = jnp.where(pos, _NEG_BIG, logit_n)     # drop the positive column
        if apply_col_mask:                              # only the ragged last tile
            col_bound = c_total - k * tc                # scalar
            logit_n = jnp.where(lane < col_bound, logit_n, _NEG_BIG)

        # Online (streaming) logsumexp over the C axis.
        m_old = m_sc[...]
        m_new = jnp.maximum(m_old, jnp.max(logit_n, axis=1, keepdims=True))
        s_sc[...] = jnp.exp(m_old - m_new) * s_sc[...] + jnp.sum(
            jnp.exp(logit_n - m_new), axis=1, keepdims=True)
        m_sc[...] = m_new

    if last_tile_padded:
        @pl.when(k < last_k)
        def _full_tile():
            _update(apply_col_mask=False)

        @pl.when(k == last_k)
        def _padded_tile():
            _update(apply_col_mask=True)
    else:
        _update(apply_col_mask=False)

    @pl.when(k == last_k)
    def _finalize():
        sp = sp_sc[...]
        lse_n = m_sc[...] + jnp.log(s_sc[...])
        # ap = clamp_min(-sp + 1 + m, 0); logit_p = -ap*(sp - (1 - m))*gamma
        # (logsumexp over the single positive logit is the identity)
        ap = jnp.maximum(-sp + 1.0 + margin, 0.0)
        logit_p = -ap * (sp - (1.0 - margin)) * gamma
        z = lse_n + logit_p
        # numerically stable softplus: max(z, 0) + log1p(exp(-|z|))
        out_ref[...] = jnp.maximum(z, 0.0) + jnp.log1p(jnp.exp(-jnp.abs(z)))


def circle_loss(x, label, *, margin: float, gamma: float,
                tb: int = 256, tc: int = 4096):
    """Pallas CircleLoss forward. x: (B, C) float, label: (B,) int -> scalar f32."""
    B, C = x.shape
    TB, TC = _choose_tiles(B, C, tb, tc)
    grid_b = pl.cdiv(B, TB)
    grid_c = pl.cdiv(C, TC)
    last_tile_padded = (C % TC) != 0

    lbl = label.reshape(B, 1).astype(jnp.int32)

    kernel = functools.partial(
        _circle_loss_kernel,
        margin=float(margin), gamma=float(gamma),
        c_total=C, last_tile_padded=last_tile_padded)

    # Double-buffered x plus small extras; capped so it is also v7x-safe.
    bytes_per_buf = TB * TC * x.dtype.itemsize
    vmem_limit = int(min(64 * 1024 * 1024, max(32 * 1024 * 1024, 4 * bytes_per_buf)))

    per_row = pl.pallas_call(
        kernel,
        out_shape=jax.ShapeDtypeStruct((B, 1), jnp.float32),
        grid_spec=pltpu.PrefetchScalarGridSpec(
            num_scalar_prefetch=0,
            grid=(grid_b, grid_c),                          # B parallel, C reduction last
            in_specs=[
                pl.BlockSpec((TB, TC), lambda i, k: (i, k)),  # streamed similarities
                pl.BlockSpec((TB, 1), lambda i, k: (i, 0)),   # per-B-tile labels
            ],
            out_specs=pl.BlockSpec((TB, 1), lambda i, k: (i, 0)),
            scratch_shapes=[pltpu.VMEM((TB, 1), jnp.float32)] * 3,
        ),
        compiler_params=pltpu.CompilerParams(
            dimension_semantics=("parallel", "arbitrary"),
            vmem_limit_bytes=vmem_limit),
    )(x, lbl)

    # Output has exactly B rows (no padding), so the batch mean is trivial.
    return jnp.mean(per_row)


def _reference_circle_loss(x, label, *, margin, gamma):
    """Pure-JAX reference mirroring the PyTorch module."""
    x = x.astype(jnp.float32)
    B, C = x.shape
    one_hot = jax.nn.one_hot(label, C, dtype=jnp.bool_)
    sp = jnp.sum(jnp.where(one_hot, x, 0.0), axis=1, keepdims=True)           # (B, 1)
    ap = jnp.maximum(-sp + 1.0 + margin, 0.0)
    logit_p = -ap * (sp - (1.0 - margin)) * gamma                              # (B, 1)
    an = jnp.maximum(x + margin, 0.0)
    logit_n = jnp.where(one_hot, -jnp.inf, an * (x - margin) * gamma)          # drop positive col
    lse_p = logit_p[:, 0]                        # logsumexp over a single column == identity
    lse_n = jax.scipy.special.logsumexp(logit_n, axis=1)
    return jnp.mean(jax.nn.softplus(lse_n + lse_p))


if __name__ == "__main__":
    MARGIN = 0.25
    GAMMA = 32.0
    key = jax.random.PRNGKey(0)

    # ---- case 1: tiny single-tile problem (TB = B = 8, TC = C = 16) ----
    B, C = 8, 16
    k_sim, k_lbl, key = jax.random.split(key, 3)
    sim = jax.random.uniform(k_sim, (B, C), dtype=jnp.float32, minval=-1.0, maxval=1.0)
    label = jax.random.randint(k_lbl, (B,), 0, C, dtype=jnp.int32)

    loss = jax.block_until_ready(circle_loss(sim, label, margin=MARGIN, gamma=GAMMA))
    ref = jax.block_until_ready(_reference_circle_loss(sim, label, margin=MARGIN, gamma=GAMMA))
    assert jnp.allclose(loss, ref, rtol=1e-5, atol=1e-5), (loss, ref)

    # bf16 streaming path (in-kernel cast to f32, matching input.float())
    loss_bf16 = jax.block_until_ready(
        circle_loss(sim.astype(jnp.bfloat16), label, margin=MARGIN, gamma=GAMMA))
    ref_bf16 = jax.block_until_ready(
        _reference_circle_loss(sim.astype(jnp.bfloat16), label, margin=MARGIN, gamma=GAMMA))
    assert jnp.allclose(loss_bf16, ref_bf16, rtol=1e-5, atol=1e-5), (loss_bf16, ref_bf16)

    # ---- case 2: multi-tile grid, ragged C (grid (3, 2), masked last C tile) ----
    B2, C2 = 24, 200
    k_sim2, k_lbl2, key = jax.random.split(key, 3)
    sim2 = jax.random.uniform(k_sim2, (B2, C2), dtype=jnp.float32, minval=-1.0, maxval=1.0)
    label2 = jax.random.randint(k_lbl2, (B2,), 0, C2, dtype=jnp.int32)

    loss2 = jax.block_until_ready(
        circle_loss(sim2, label2, margin=MARGIN, gamma=GAMMA, tb=8, tc=128))
    ref2 = jax.block_until_ready(
        _reference_circle_loss(sim2, label2, margin=MARGIN, gamma=GAMMA))
    assert jnp.allclose(loss2, ref2, rtol=1e-5, atol=1e-5), (loss2, ref2)

    # ---- case 3: ragged B and ragged C (partial last B tile + partial C tile) ----
    B3, C3 = 12, 300
    k_sim3, k_lbl3, key = jax.random.split(key, 3)
    sim3 = jax.random.uniform(k_sim3, (B3, C3), dtype=jnp.float32, minval=-1.0, maxval=1.0)
    label3 = jax.random.randint(k_lbl3, (B3,), 0, C3, dtype=jnp.int32)

    loss3 = jax.block_until_ready(
        circle_loss(sim3, label3, margin=MARGIN, gamma=GAMMA, tb=8, tc=128))
    ref3 = jax.block_until_ready(
        _reference_circle_loss(sim3, label3, margin=MARGIN, gamma=GAMMA))
    assert jnp.allclose(loss3, ref3, rtol=1e-5, atol=1e-5), (loss3, ref3)

    print("KERNEL_OK")
</pallas_src>

<mosaic_0001>
module attributes {stable_mosaic.version = 11 : i64} {
  func.func @_circle_loss_kernel(%arg0: i32, %arg1: i32, %arg2: memref<8x16xf32, #tpu.memory_space<vmem>>, %arg3: memref<8x1xi32, #tpu.memory_space<vmem>>, %arg4: memref<8x1xf32, #tpu.memory_space<vmem>>, %arg5: memref<8x1xf32, #tpu.memory_space<vmem>>, %arg6: memref<8x1xf32, #tpu.memory_space<vmem>>, %arg7: memref<8x1xf32, #tpu.memory_space<vmem>>) attributes {dimension_semantics = [#tpu.dimension_semantics<parallel>, #tpu.dimension_semantics<arbitrary>], iteration_bounds = array<i64: 1, 1>, scalar_prefetch = 0 : i64, scratch_operands = 3 : i64, tpu.core_type = #tpu.core_type<tc>, window_params = [{transform_indices = @transform_0, window_bounds = array<i64: 8, 16>}, {transform_indices = @transform_1, window_bounds = array<i64: 8, 1>}, {transform_indices = @transform_2, window_bounds = array<i64: 8, 1>}]} {
    %c0_i32 = arith.constant 0 : i32
    %0 = arith.cmpi eq, %arg1, %c0_i32 : i32
    %1 = arith.extui %0 : i1 to i32
    %c0_i32_0 = arith.constant 0 : i32
    %2 = arith.cmpi ne, %1, %c0_i32_0 : i32
    scf.if %2 {
      %cst_26 = arith.constant -1.000000e+30 : f32
      %48 = vector.broadcast %cst_26 : f32 to vector<8x1xf32>
      %c0_27 = arith.constant 0 : index
      %c0_28 = arith.constant 0 : index
      %49 = vector.load %arg5[%c0_27, %c0_28] : memref<8x1xf32, #tpu.memory_space<vmem>>, vector<8x1xf32>
      tpu.vector_store %arg5[%c0_27, %c0_28], %48 {strides = array<i32>} : memref<8x1xf32, #tpu.memory_space<vmem>>, vector<8x1xf32>,
      %cst_29 = arith.constant 0.000000e+00 : f32
      %50 = vector.broadcast %cst_29 : f32 to vector<8x1xf32>
      %c0_30 = arith.constant 0 : index
      %c0_31 = arith.constant 0 : index
      %51 = vector.load %arg6[%c0_30, %c0_31] : memref<8x1xf32, #tpu.memory_space<vmem>>, vector<8x1xf32>
      tpu.vector_store %arg6[%c0_30, %c0_31], %50 {strides = array<i32>} : memref<8x1xf32, #tpu.memory_space<vmem>>, vector<8x1xf32>,
      %cst_32 = arith.constant 0.000000e+00 : f32
      %52 = vector.broadcast %cst_32 : f32 to vector<8x1xf32>
      %c0_33 = arith.constant 0 : index
      %c0_34 = arith.constant 0 : index
      %53 = vector.load %arg7[%c0_33, %c0_34] : memref<8x1xf32, #tpu.memory_space<vmem>>, vector<8x1xf32>
      tpu.vector_store %arg7[%c0_33, %c0_34], %52 {strides = array<i32>} : memref<8x1xf32, #tpu.memory_space<vmem>>, vector<8x1xf32>,
    } else {
    }
    %c0 = arith.constant 0 : index
    %c0_1 = arith.constant 0 : index
    %3 = vector.load %arg2[%c0, %c0_1] : memref<8x16xf32, #tpu.memory_space<vmem>>, vector<8x16xf32>
    %4 = tpu.iota {dimensions = array<i32: 1>} : vector<8x16xi32>
    %c0_2 = arith.constant 0 : index
    %c0_3 = arith.constant 0 : index
    %5 = vector.load %arg3[%c0_2, %c0_3] : memref<8x1xi32, #tpu.memory_space<vmem>>, vector<8x1xi32>
    %c16_i32 = arith.constant 16 : i32
    %6 = arith.muli %arg1, %c16_i32 : i32
    %7 = vector.broadcast %6 : i32 to vector<8x1xi32>
    %8 = arith.subi %5, %7 : vector<8x1xi32>
    %9 = vector.broadcast %8 : vector<8x1xi32> to vector<8x16xi32>
    %10 = arith.cmpi eq, %4, %9 : vector<8x16xi32>
    %c0_4 = arith.constant 0 : index
    %c0_5 = arith.constant 0 : index
    %11 = vector.load %arg7[%c0_4, %c0_5] : memref<8x1xf32, #tpu.memory_space<vmem>>, vector<8x1xf32>
    %cst = arith.constant 0.000000e+00 : f32
    %12 = vector.broadcast %cst : f32 to vector<8x16xf32>
    %13 = arith.select %10, %3, %12 : vector<8x16xi1>, vector<8x16xf32>
    %cst_6 = arith.constant dense<0.000000e+00> : vector<8xf32>
    %14 = vector.multi_reduction <add>, %13, %cst_6 [1] : vector<8x16xf32> to vector<8xf32>
    %15 = vector.shape_cast %14 : vector<8xf32> to vector<8x1xf32>
    %16 = arith.addf %11, %15 : vector<8x1xf32>
    %c0_7 = arith.constant 0 : index
    %c0_8 = arith.constant 0 : index
    %17 = vector.load %arg7[%c0_7, %c0_8] : memref<8x1xf32, #tpu.memory_space<vmem>>, vector<8x1xf32>
    tpu.vector_store %arg7[%c0_7, %c0_8], %16 {strides = array<i32>} : memref<8x1xf32, #tpu.memory_space<vmem>>, vector<8x1xf32>,
    %cst_9 = arith.constant 2.500000e-01 : f32
    %18 = vector.broadcast %cst_9 : f32 to vector<8x16xf32>
    %19 = arith.addf %3, %18 : vector<8x16xf32>
    %cst_10 = arith.constant 0.000000e+00 : f32
    %20 = vector.broadcast %cst_10 : f32 to vector<8x16xf32>
    %21 = arith.maximumf %19, %20 : vector<8x16xf32>
    %cst_11 = arith.constant 2.500000e-01 : f32
    %22 = vector.broadcast %cst_11 : f32 to vector<8x16xf32>
    %23 = arith.subf %3, %22 : vector<8x16xf32>
    %24 = arith.mulf %21, %23 : vector<8x16xf32>
    %cst_12 = arith.constant 3.200000e+01 : f32
    %25 = vector.broadcast %cst_12 : f32 to vector<8x16xf32>
    %26 = arith.mulf %24, %25 : vector<8x16xf32>
    %cst_13 = arith.constant -1.000000e+30 : f32
    %27 = vector.broadcast %cst_13 : f32 to vector<8x16xf32>
    %28 = arith.select %10, %27, %26 : vector<8x16xi1>, vector<8x16xf32>
    %c0_14 = arith.constant 0 : index
    %c0_15 = arith.constant 0 : index
    %29 = vector.load %arg5[%c0_14, %c0_15] : memref<8x1xf32, #tpu.memory_space<vmem>>, vector<8x1xf32>
    %cst_16 = arith.constant dense<0xFF800000> : vector<8xf32>
    %30 = vector.multi_reduction <maximumf>, %28, %cst_16 [1] : vector<8x16xf32> to vector<8xf32>
    %31 = vector.shape_cast %30 : vector<8xf32> to vector<8x1xf32>
    %32 = arith.maximumf %29, %31 : vector<8x1xf32>
    %33 = arith.subf %29, %32 : vector<8x1xf32>
    %34 = math.exp %33 : vector<8x1xf32>
    %c0_17 = arith.constant 0 : index
    %c0_18 = arith.constant 0 : index
    %35 = vector.load %arg6[%c0_17, %c0_18] : memref<8x1xf32, #tpu.memory_space<vmem>>, vector<8x1xf32>
    %36 = arith.mulf %34, %35 : vector<8x1xf32>
    %37 = vector.broadcast %32 : vector<8x1xf32> to vector<8x16xf32>
    %38 = arith.subf %28, %37 : vector<8x16xf32>
    %39 = math.exp %38 : vector<8x16xf32>
    %cst_19 = arith.constant dense<0.000000e+00> : vector<8xf32>
    %40 = vector.multi_reduction <add>, %39, %cst_19 [1] : vector<8x16xf32> to vector<8xf32>
    %41 = vector.shape_cast %40 : vector<8xf32> to vector<8x1xf32>
    %42 = arith.addf %36, %41 : vector<8x1xf32>
    %c0_20 = arith.constant 0 : index
    %c0_21 = arith.constant 0 : index
    %43 = vector.load %arg6[%c0_20, %c0_21] : memref<8x1xf32, #tpu.memory_space<vmem>>, vector<8x1xf32>
    tpu.vector_store %arg6[%c0_20, %c0_21], %42 {strides = array<i32>} : memref<8x1xf32, #tpu.memory_space<vmem>>, vector<8x1xf32>,
    %c0_22 = arith.constant 0 : index
    %c0_23 = arith.constant 0 : index
    %44 = vector.load %arg5[%c0_22, %c0_23] : memref<8x1xf32, #tpu.memory_space<vmem>>, vector<8x1xf32>
    tpu.vector_store %arg5[%c0_22, %c0_23], %32 {strides = array<i32>} : memref<8x1xf32, #tpu.memory_space<vmem>>, vector<8x1xf32>,
    %c0_i32_24 = arith.constant 0 : i32
    %45 = arith.cmpi eq, %arg1, %c0_i32_24 : i32
    %46 = arith.extui %45 : i1 to i32
    %c0_i32_25 = arith.constant 0 : i32
    %47 = arith.cmpi ne, %46, %c0_i32_25 : i32
    scf.if %47 {
      %c0_26 = arith.constant 0 : index
      %c0_27 = arith.constant 0 : index
      %48 = vector.load %arg7[%c0_26, %c0_27] : memref<8x1xf32, #tpu.memory_space<vmem>>, vector<8x1xf32>
      %c0_28 = arith.constant 0 : index
      %c0_29 = arith.constant 0 : index
      %49 = vector.load %arg5[%c0_28, %c0_29] : memref<8x1xf32, #tpu.memory_space<vmem>>, vector<8x1xf32>
      %c0_30 = arith.constant 0 : index
      %c0_31 = arith.constant 0 : index
      %50 = vector.load %arg6[%c0_30, %c0_31] : memref<8x1xf32, #tpu.memory_space<vmem>>, vector<8x1xf32>
      %51 = math.log %50 : vector<8x1xf32>
      %52 = arith.addf %49, %51 : vector<8x1xf32>
      %cst_32 = arith.constant 0.000000e+00 : f32
      %53 = vector.broadcast %cst_32 : f32 to vector<8x1xf32>
      %54 = arith.subf %53, %48 : vector<8x1xf32>
      %cst_33 = arith.constant 1.000000e+00 : f32
      %55 = vector.broadcast %cst_33 : f32 to vector<8x1xf32>
      %56 = arith.addf %54, %55 : vector<8x1xf32>
      %cst_34 = arith.constant 2.500000e-01 : f32
      %57 = vector.broadcast %cst_34 : f32 to vector<8x1xf32>
      %58 = arith.addf %56, %57 : vector<8x1xf32>
      %cst_35 = arith.constant 0.000000e+00 : f32
      %59 = vector.broadcast %cst_35 : f32 to vector<8x1xf32>
      %60 = arith.maximumf %58, %59 : vector<8x1xf32>
      %cst_36 = arith.constant 0.000000e+00 : f32
      %61 = vector.broadcast %cst_36 : f32 to vector<8x1xf32>
      %62 = arith.subf %61, %60 : vector<8x1xf32>
      %cst_37 = arith.constant 7.500000e-01 : f32
      %63 = vector.broadcast %cst_37 : f32 to vector<8x1xf32>
      %64 = arith.subf %48, %63 : vector<8x1xf32>
      %65 = arith.mulf %62, %64 : vector<8x1xf32>
      %cst_38 = arith.constant 3.200000e+01 : f32
      %66 = vector.broadcast %cst_38 : f32 to vector<8x1xf32>
      %67 = arith.mulf %65, %66 : vector<8x1xf32>
      %68 = arith.addf %52, %67 : vector<8x1xf32>
      %cst_39 = arith.constant 0.000000e+00 : f32
      %69 = vector.broadcast %cst_39 : f32 to vector<8x1xf32>
      %70 = arith.maximumf %68, %69 : vector<8x1xf32>
      %71 = math.absf %68 : vector<8x1xf32>
      %cst_40 = arith.constant 0.000000e+00 : f32
      %72 = vector.broadcast %cst_40 : f32 to vector<8x1xf32>
      %73 = arith.subf %72, %71 : vector<8x1xf32>
      %74 = math.exp %73 : vector<8x1xf32>
      %75 = math.log1p %74 : vector<8x1xf32>
      %76 = arith.addf %70, %75 : vector<8x1xf32>
      %c0_41 = arith.constant 0 : index
      %c0_42 = arith.constant 0 : index
      %77 = vector.load %arg4[%c0_41, %c0_42] : memref<8x1xf32, #tpu.memory_space<vmem>>, vector<8x1xf32>
      tpu.vector_store %arg4[%c0_41, %c0_42], %76 {strides = array<i32>} : memref<8x1xf32, #tpu.memory_space<vmem>>, vector<8x1xf32>,
    } else {
    }
    return
  }
  func.func @transform_0(%arg0: i32, %arg1: i32) -> (i32, i32) {
    %c0_i32 = arith.constant 0 : i32
    return %arg0, %arg1 : i32, i32
  }
  func.func @transform_1(%arg0: i32, %arg1: i32) -> (i32, i32) {
    %c0_i32 = arith.constant 0 : i32
    %c0_i32_0 = arith.constant 0 : i32
    return %arg0, %c0_i32 : i32, i32
  }
  func.func @transform_2(%arg0: i32, %arg1: i32) -> (i32, i32) {
    %c0_i32 = arith.constant 0 : i32
    %c0_i32_0 = arith.constant 0 : i32
    return %arg0, %c0_i32 : i32, i32
  }
}

</mosaic_0001>

<llo_original>
// kernel: tpu_custom_call.1
$region0: #{tpu_custom_call.1}
  #allocation0 [shape = 'u32[]', space=smem, size = 0x4, offset = 0x4, fixed_abs, tag = 'smem constant byte address 0x4 - core index']
  #allocation1 [shape = 'u32[72,128]{1,0:T(1,128)}', space=vmem, size = 0x9000, scoped, tag = 'internal scratch']
  #allocation2 [shape = 'f32[8,1]{1,0:T(8,128)}', space=vmem, size = 0x1000, scoped, tag = 'scratch operand']
  #allocation3 [shape = 'f32[8,1]{1,0:T(8,128)}', space=vmem, size = 0x1000, scoped, tag = 'scratch operand']
  #allocation4 [shape = 'f32[8,1]{1,0:T(8,128)}', space=vmem, size = 0x1000, scoped, tag = 'scratch operand']
  %s0 = inlined_call_operand.vmem [shape: f32[8,16], index: 0, kind: input, shape index: {}]
  %s1 = inlined_call_operand.vmem [shape: s32[8,1], index: 1, kind: input, shape index: {}]
  %s2 = inlined_call_operand.vmem [shape: f32[8,1], index: 2, kind: output, shape index: {}]
  %s3 = sld [smem:[#allocation0]]
  $region26: #{tpu_custom_call.1} parent=0
    _
  %s5 = ssub.s32 1, %s3
  %s6 = scalar_select 0, %s5, %s3
  // Predicated region
  $region2: #{tpu_custom_call.1} parent=0 // pred_check
    _
  $region3: #{tpu_custom_call.1} parent=0 // pred_check_branch
    %8 = sbr.rel (0) target = $region5
  $region4: #{tpu_custom_call.1} parent=0 // pred_region
    _
  $region5: #{tpu_custom_call.1} parent=0 // pred_fallthru
    _
  // Predicated region
  $region6: #{tpu_custom_call.1} parent=0 // pred_check
    _
  $region7: #{tpu_custom_call.1} parent=0 // pred_check_branch
    %10 = sbr.rel (0) target = $region9
  $region8: #{tpu_custom_call.1} parent=0 // pred_region
    _
  $region9: #{tpu_custom_call.1} parent=0 // pred_fallthru
    _
  %p11 = scmp.eq.s32.totalorder 0, 0
  // Predicated region
  $region10: #{tpu_custom_call.1} parent=0 // pred_check
    %p12 = pneg %p11
  $region11: #{tpu_custom_call.1} parent=0 // pred_check_branch
    %14 = sbr.rel (%p12) target = $region13
  $region12: #{tpu_custom_call.1} parent=0 // pred_region
    %vm15 = vcmask 7168
    %16 = vst.msk [vmem:[#allocation2] sm:$0xff] %vm15, -1e+30
    %17 = vst.msk [vmem:[#allocation3] sm:$0xff] %vm15, 0.0
    %18 = vst.msk [vmem:[#allocation4] sm:$0xff] %vm15, 0.0
  $region13: #{tpu_custom_call.1} parent=0 // pred_fallthru
    _
  %v19 = vld [vmem:[%s0] sm:$0xff]
  %v20 = vlaneseq
  %v21 = vand.u32 %v20, 127
  %v22 = vld [vmem:[%s1] sm:$0xff]
  %s23 = smul.u32 0, 16
  %v24 = vstv %s23
  %v25 = vsub.s32 %v22, %v24
  %26 = vset.pattern.permute.xlu0 0
  %27 = vperm.xlu0 %26, %v25
  %v28 = vpop.permute.xlu0 %27
  %vm29 = vcmp.eq.s32.totalorder %v21, %v28
  %v30 = vld [vmem:[#allocation4] sm:$0xff]
  %v31 = vsel %vm29, %v19, 0.0
  %vm32 = vcmask 130048
  %v33 = vsel %vm32, %v31, 0.0
  %34 = vadd.xlane.f32.xlu0 %v33
  %v35 = vpop.xlane.xlu0 %34
  %v36 = vadd.f32 %v30, %v35
  %vm37 = vcmask 7168
  %38 = vst.msk [vmem:[#allocation4] sm:$0xff] %vm37, %v36
  %v39 = vadd.f32 %v19, 0.25
  %v40 = vmax.f32 %v39, 0.0
  %v41 = vsub.f32 %v19, 0.25
  %v42 = vmul.f32 %v40, %v41
  %v43 = vmul.f32 %v42, 32.0
  %v44 = vsel %vm29, -1e+30, %v43
  %v45 = vld [vmem:[#allocation2] sm:$0xff]
  %v46 = vsel %vm32, %v44, -inf
  %47 = vmax.xlane.f32.xlu0 %v46
  %v48 = vpop.xlane.xlu0 %47
  %v49 = vmax.f32 %v45, %v48
  %v50 = vsub.f32 %v45, %v49
  %v51 = vmul.f32 %v50, 1.442695
  %v52 = vpow.pop %v51
  %v53 = vld [vmem:[#allocation3] sm:$0xff]
  %v54 = vmul.f32 %v52, %v53
  %56 = vset.pattern.permute.xlu0 0
  %57 = vperm.xlu0 %56, %v49
  %v58 = vpop.permute.xlu0 %57
  %v60 = vsub.f32 %v44, %v58
  %v61 = vmul.f32 %v60, 1.442695
  %v62 = vpow.pop %v61
  %v63 = vsel %vm32, %v62, 0.0
  %64 = vadd.xlane.f32.xlu0 %v63
  %v65 = vpop.xlane.xlu0 %64
  %v66 = vadd.f32 %v54, %v65
  %67 = vst.msk [vmem:[#allocation3] sm:$0xff] %vm37, %v66
  %68 = vst.msk [vmem:[#allocation2] sm:$0xff] %vm37, %v49
  // Predicated region
  $region14: #{tpu_custom_call.1} parent=0 // pred_check
    %p69 = pneg %p11
  $region15: #{tpu_custom_call.1} parent=0 // pred_check_branch
    %71 = sbr.rel (%p69) target = $region17
  $region16: #{tpu_custom_call.1} parent=0 // pred_region
    %v72 = vld [vmem:[#allocation4] sm:$0xff]
    %v73 = vld [vmem:[#allocation2] sm:$0xff]
    %v74 = vld [vmem:[#allocation3] sm:$0xff]
    %v75 = vlog2.pop %v74
    %v76 = vmul.f32 %v75, 0.6931472
    %v77 = vadd.f32 %v73, %v76
    %v78 = vsub.f32 0.0, %v72
    %v79 = vadd.f32 %v78, 1.0
    %v80 = vadd.f32 %v79, 0.25
    %v81 = vmax.f32 %v80, 0.0
    %v82 = vsub.f32 0.0, %v81
    %v83 = vsub.f32 %v72, 0.75
    %v84 = vmul.f32 %v82, %v83
    %v85 = vmul.f32 %v84, 32.0
    %v86 = vadd.f32 %v77, %v85
    %v87 = vmax.f32 %v86, 0.0
    %v88 = vand.u32 2147483647, %v86
    %v89 = vsub.f32 0.0, %v88
    %v90 = vmul.f32 %v89, 1.442695
    %v91 = vpow.pop %v90
    %v92 = vadd.f32 %v91, 1.0
    %v93 = vlog2.pop %v92
    %v94 = vmul.f32 %v93, 0.6931472
    %v95 = vmul.f32 -0.5, %v91
    %v96 = vadd.f32 %v95, 1.0
    %v97 = vmul.f32 %v96, %v91
    %v98 = vand.u32 2147483647, %v91
    %vm99 = vcmp.lt.f32.partialorder %v98, 0.0004427343
    %v100 = vsel %vm99, %v97, %v94
    %v101 = vadd.f32 %v87, %v100
    %102 = vst.msk [vmem:[%s2] sm:$0xff] %vm37, %v101
  $region17: #{tpu_custom_call.1} parent=0 // pred_fallthru
    _
  // Predicated region
  $region18: #{tpu_custom_call.1} parent=0 // pred_check
    _
  $region19: #{tpu_custom_call.1} parent=0 // pred_check_branch
    %104 = sbr.rel (0) target = $region21
  $region20: #{tpu_custom_call.1} parent=0 // pred_region
    _
  $region21: #{tpu_custom_call.1} parent=0 // pred_fallthru
    _
  // Predicated region
  $region22: #{tpu_custom_call.1} parent=0 // pred_check
    _
  $region23: #{tpu_custom_call.1} parent=0 // pred_check_branch
    %106 = sbr.rel (0) target = $region25
  $region24: #{tpu_custom_call.1} parent=0 // pred_region
    _
  $region25: #{tpu_custom_call.1} parent=0 // pred_fallthru
    _

</llo_original>
